<compile_context>
chip_gen: v7x
topology: tpu7x:2x2x1
jax: 0.10.0
libtpu: 0.0.40
codegen_flags: <defaults>
</compile_context>

<pallas_src>
import functools
import math

import jax
import jax.numpy as jnp
from jax.experimental import pallas as pl
from jax.experimental.pallas import tpu as pltpu


_DEFAULT_VMEM_LIMIT = 32 * 1024 * 1024   # safe on v5e/v6e (128 MiB phys) and v7x (64 MiB phys)
_TARGET_BLOCK_BYTES = 4 * 1024 * 1024    # target bytes per x/out block


def _round_up(n: int, m: int) -> int:
    return ((n + m - 1) // m) * m


# ---------------------------------------------------------------------------
# Kernel: out = x + pe (pe broadcast over batch, batch folded into lanes)
# ---------------------------------------------------------------------------
def pe_add_kernel(x_ref, pe_ref, o_ref, *, batch: int, d_model: int, rows: int):
    # x_ref / o_ref : (rows, batch * d_model)  -- sequence tile, batch in lanes
    # pe_ref        : (>=rows, d_model)        -- pe tile (rows rounded up to 8)
    pe = pe_ref[0:rows, :]                       # static slice; no-op when rows == block rows
    for b in range(batch):                       # static unrolled loop, D-aligned lane slabs
        lo = b * d_model
        o_ref[:, lo:lo + d_model] = x_ref[:, lo:lo + d_model] + pe


def _choose_seq_tile(seq_len: int, row_bytes: int) -> int:
    """Largest multiple-of-8 sequence tile with ~_TARGET_BLOCK_BYTES per block."""
    ts = max(8, (_TARGET_BLOCK_BYTES // max(1, row_bytes)) // 8 * 8)
    if ts < seq_len:
        return ts                                # >= 2 grid steps, multiple of 8
    if seq_len >= 16:
        # Whole sequence fits one block: split in two so both v7x TensorCores work.
        return min(seq_len, _round_up((seq_len + 1) // 2, 8))
    return seq_len                               # tiny sequence: single full-extent block


# ---------------------------------------------------------------------------
# Module
# ---------------------------------------------------------------------------
class PositionalEncoding:
    def __init__(self, d_model: int, max_len: int = 5000):
        assert d_model % 2 == 0, "d_model must be even (matches PyTorch slicing)"
        padded_len = _round_up(max_len, 8)       # keep pe rows a clean sublane multiple
        position = jnp.arange(padded_len, dtype=jnp.float32)[:, None]            # (L, 1)
        div_term = jnp.exp(
            jnp.arange(0, d_model, 2, dtype=jnp.float32)
            * (-math.log(10000.0) / d_model)
        )                                                                          # (D/2,)
        angles = position * div_term                                               # (L, D/2)
        pe2d = jnp.stack([jnp.sin(angles), jnp.cos(angles)], axis=-1)              # (L, D/2, 2)
        pe2d = pe2d.reshape(padded_len, d_model)                                   # (L, D) interleaved

        self.d_model = d_model
        self.max_len = max_len
        self._pe2d_f32 = pe2d
        self._pe_cache = {jnp.dtype(jnp.float32): pe2d}
        # PyTorch-style buffer (max_len, 1, d_model) kept for reference/inspection.
        self.pe = pe2d[:max_len, None, :]

    def _pe_table(self, dtype) -> jax.Array:
        key = jnp.dtype(dtype)
        if key not in self._pe_cache:
            self._pe_cache[key] = self._pe2d_f32.astype(key)   # cast once, reuse
        return self._pe_cache[key]

    def __call__(self, x: jax.Array) -> jax.Array:
        S, B, D = x.shape
        assert D == self.d_model
        assert S <= self.max_len

        itemsize = jnp.dtype(x.dtype).itemsize
        pe = self._pe_table(x.dtype)             # (padded_max_len, D) in activation dtype

        # Fold batch into lanes: merging trailing contiguous dims is free and makes
        # the sublane dim the (dense) sequence tile even when B < 8.
        x2 = x.reshape(S, B * D)

        ts = _choose_seq_tile(S, B * D * itemsize)
        ts_pe = _round_up(ts, 8)                 # pe block rows must divide 8 (pe table is padded)
        grid = (pl.cdiv(S, ts),)

        x_block_bytes = ts * B * D * itemsize
        pe_block_bytes = ts_pe * D * itemsize
        vmem_limit = max(
            _DEFAULT_VMEM_LIMIT,
            int(2 * (2 * x_block_bytes + pe_block_bytes) * 1.25) + (1 << 20),
        )

        kernel = functools.partial(pe_add_kernel, batch=B, d_model=D, rows=ts)
        out2 = pl.pallas_call(
            kernel,
            out_shape=jax.ShapeDtypeStruct((S, B * D), x.dtype),
            grid_spec=pltpu.PrefetchScalarGridSpec(
                num_scalar_prefetch=0,
                grid=grid,
                in_specs=[
                    pl.BlockSpec((ts, B * D), lambda i: (i, 0)),
                    # Full pe table passed; the grid only touches the first ceil(S/ts) blocks.
                    pl.BlockSpec((ts_pe, D), lambda i: (i, 0)),
                ],
                out_specs=pl.BlockSpec((ts, B * D), lambda i: (i, 0)),
            ),
            compiler_params=pltpu.CompilerParams(
                dimension_semantics=("parallel",),
                vmem_limit_bytes=vmem_limit,
            ),
        )(x2, pe)
        return out2.reshape(S, B, D)


# ---------------------------------------------------------------------------
# Main
# ---------------------------------------------------------------------------
if __name__ == "__main__":
    seq_len, batch, d_model = 8, 2, 128
    max_len = 64

    key = jax.random.PRNGKey(0)
    x = jax.random.normal(key, (seq_len, batch, d_model), dtype=jnp.float32)

    module = PositionalEncoding(d_model, max_len=max_len)
    out = jax.block_until_ready(module(x))

    # sanity check against pure-JAX reference (same semantics as PyTorch forward)
    ref = x + module.pe[:seq_len]
    assert out.shape == (seq_len, batch, d_model)
    assert jnp.allclose(out, ref, atol=1e-6), "mismatch vs reference"

    print("KERNEL_OK")
</pallas_src>

<mosaic_0001>
module attributes {stable_mosaic.version = 11 : i64} {
  func.func @pe_add_kernel(%arg0: i32, %arg1: memref<8x256xf32, #tpu.memory_space<vmem>>, %arg2: memref<8x128xf32, #tpu.memory_space<vmem>>, %arg3: memref<8x256xf32, #tpu.memory_space<vmem>>) attributes {dimension_semantics = [#tpu.dimension_semantics<parallel>], iteration_bounds = array<i64: 1>, scalar_prefetch = 0 : i64, scratch_operands = 0 : i64, tpu.core_type = #tpu.core_type<tc>, window_params = [{transform_indices = @transform_0, window_bounds = array<i64: 8, 256>}, {transform_indices = @transform_1, window_bounds = array<i64: 8, 128>}, {transform_indices = @transform_2, window_bounds = array<i64: 8, 256>}]} {
    %c0 = arith.constant 0 : index
    %c0_0 = arith.constant 0 : index
    %0 = vector.load %arg2[%c0, %c0_0] : memref<8x128xf32, #tpu.memory_space<vmem>>, vector<8x128xf32>
    %c0_1 = arith.constant 0 : index
    %c0_2 = arith.constant 0 : index
    %1 = vector.load %arg1[%c0_1, %c0_2] : memref<8x256xf32, #tpu.memory_space<vmem>>, vector<8x128xf32>
    %2 = arith.addf %1, %0 : vector<8x128xf32>
    %c0_3 = arith.constant 0 : index
    %c0_4 = arith.constant 0 : index
    %3 = vector.load %arg3[%c0_3, %c0_4] : memref<8x256xf32, #tpu.memory_space<vmem>>, vector<8x128xf32>
    tpu.vector_store %arg3[%c0_3, %c0_4], %2 {strides = array<i32>} : memref<8x256xf32, #tpu.memory_space<vmem>>, vector<8x128xf32>,
    %c0_5 = arith.constant 0 : index
    %c128 = arith.constant 128 : index
    %4 = vector.load %arg1[%c0_5, %c128] : memref<8x256xf32, #tpu.memory_space<vmem>>, vector<8x128xf32>
    %5 = arith.addf %4, %0 : vector<8x128xf32>
    %c0_6 = arith.constant 0 : index
    %c128_7 = arith.constant 128 : index
    %6 = vector.load %arg3[%c0_6, %c128_7] : memref<8x256xf32, #tpu.memory_space<vmem>>, vector<8x128xf32>
    tpu.vector_store %arg3[%c0_6, %c128_7], %5 {strides = array<i32>} : memref<8x256xf32, #tpu.memory_space<vmem>>, vector<8x128xf32>,
    return
  }
  func.func @transform_0(%arg0: i32) -> (i32, i32) {
    %c0_i32 = arith.constant 0 : i32
    %c0_i32_0 = arith.constant 0 : i32
    return %arg0, %c0_i32 : i32, i32
  }
  func.func @transform_1(%arg0: i32) -> (i32, i32) {
    %c0_i32 = arith.constant 0 : i32
    %c0_i32_0 = arith.constant 0 : i32
    return %arg0, %c0_i32 : i32, i32
  }
  func.func @transform_2(%arg0: i32) -> (i32, i32) {
    %c0_i32 = arith.constant 0 : i32
    %c0_i32_0 = arith.constant 0 : i32
    return %arg0, %c0_i32 : i32, i32
  }
}

</mosaic_0001>

<llo_original>
// kernel: tpu_custom_call.1
$region0: #{tpu_custom_call.1}
  #allocation0 [shape = 'u32[]', space=smem, size = 0x4, offset = 0x4, fixed_abs, tag = 'smem constant byte address 0x4 - core index']
  #allocation1 [shape = 'u32[144,128]{1,0:T(1,128)}', space=vmem, size = 0x12000, scoped, tag = 'internal scratch']
  %s0 = inlined_call_operand.hbm [shape: f32[8,256], index: 0, kind: input, shape index: {}]
  %s1 = inlined_call_operand.hbm [shape: f32[64,128], index: 1, kind: input, shape index: {}]
  %s2 = inlined_call_operand.hbm [shape: f32[8,256], index: 2, kind: output, shape index: {}]
  %s3 = sld [smem:[#allocation0]]
  $region26: #{tpu_custom_call.1} parent=0
    _
  %s5 = ssub.s32 1, %s3
  %s6 = scalar_select 0, %s5, %s3
  $region1: #{tpu_custom_call.1} parent=0
    #allocation2 [shape = 'u8[8192]{0}', space=vmem, size = 0x2000, scoped, tag = 'input window, operand 0, single buffered']
    #allocation3 [shape = 's32[1]{0}', space=sflag, size = 0x4, scoped, tag = 'scoped memory for tpu_custom_call.1']
    #allocation4 [shape = 's32[1]{0}', space=sflag, size = 0x4, scoped, tag = 'scoped memory for tpu_custom_call.1']
    #allocation5 [shape = 'u8[4096]{0}', space=vmem, size = 0x1000, scoped, tag = 'input window, operand 1, single buffered']
    #allocation6 [shape = 's32[1]{0}', space=sflag, size = 0x4, scoped, tag = 'scoped memory for tpu_custom_call.1']
    #allocation7 [shape = 'u8[8192]{0}', space=vmem, size = 0x2000, scoped, tag = 'output window, operand 0, single buffered']
    %7 = vsyncpa [#allocation3], 0
    %8 = vsyncpa [#allocation6], 0
    %9 = vsyncpa [#allocation4], 0
    // Predicated region
    $region2: #{tpu_custom_call.1} parent=1 // pred_check
      _
    $region3: #{tpu_custom_call.1} parent=1 // pred_check_branch
      %11 = sbr.rel (0) target = $region5
    $region4: #{tpu_custom_call.1} parent=1 // pred_region
      %s13 = ssub.s32 256, 256
      %14 = vsyncadd [#allocation3], %s13
      %s16 = sshll.u32 [#allocation2], 4
      %s17 = int_to_ptr.vmem [resolvable:$true] %s16
      %19 = dma.hbm_to_vmem [thread:$0]  %s0, 256, %s17, [#allocation3]
    $region5: #{tpu_custom_call.1} parent=1 // pred_fallthru
      _
    // Predicated region
    $region6: #{tpu_custom_call.1} parent=1 // pred_check
      _
    $region7: #{tpu_custom_call.1} parent=1 // pred_check_branch
      %21 = sbr.rel (0) target = $region9
    $region8: #{tpu_custom_call.1} parent=1 // pred_region
      %s23 = ssub.s32 128, 128
      %24 = vsyncadd [#allocation6], %s23
      %s26 = sshll.u32 [#allocation5], 4
      %s27 = int_to_ptr.vmem [resolvable:$true] %s26
      %29 = dma.hbm_to_vmem [thread:$0]  %s1, 128, %s27, [#allocation6]
    $region9: #{tpu_custom_call.1} parent=1 // pred_fallthru
      _
    // Predicated region
    $region10: #{tpu_custom_call.1} parent=1 // pred_check
      _
    $region11: #{tpu_custom_call.1} parent=1 // pred_check_branch
      %31 = sbr.rel (0) target = $region13
    $region12: #{tpu_custom_call.1} parent=1 // pred_region
      %32 = dma.done [#allocation3], 256
    $region13: #{tpu_custom_call.1} parent=1 // pred_fallthru
      _
    // Predicated region
    $region14: #{tpu_custom_call.1} parent=1 // pred_check
      _
    $region15: #{tpu_custom_call.1} parent=1 // pred_check_branch
      %34 = sbr.rel (0) target = $region17
    $region16: #{tpu_custom_call.1} parent=1 // pred_region
      %35 = dma.done [#allocation6], 128
    $region17: #{tpu_custom_call.1} parent=1 // pred_fallthru
      _
    %v36 = vld [vmem:[#allocation5] sm:$0xff]
    %v37 = vld [vmem:[#allocation2] sm:$0xff]
    %v38 = vadd.f32 %v37, %v36
    %39 = vst [vmem:[#allocation7] sm:$0xff] %v38
    %v40 = vld [vmem:[#allocation2 + $0x8] sm:$0xff]
    %v41 = vadd.f32 %v40, %v36
    %42 = vst [vmem:[#allocation7 + $0x8] sm:$0xff] %v41
    // Predicated region
    $region18: #{tpu_custom_call.1} parent=1 // pred_check
      _
    $region19: #{tpu_custom_call.1} parent=1 // pred_check_branch
      %44 = sbr.rel (0) target = $region21
    $region20: #{tpu_custom_call.1} parent=1 // pred_region
      %s46 = ssub.s32 256, 256
      %47 = vsyncadd [#allocation4], %s46
      %s49 = sshll.u32 [#allocation7], 4
      %s50 = int_to_ptr.vmem [resolvable:$true] %s49
      %52 = dma.vmem_to_hbm [thread:$0]  %s50, 256, %s2, [#allocation4]
    $region21: #{tpu_custom_call.1} parent=1 // pred_fallthru
      _
    // Predicated region
    $region22: #{tpu_custom_call.1} parent=1 // pred_check
      _
    $region23: #{tpu_custom_call.1} parent=1 // pred_check_branch
      %54 = sbr.rel (0) target = $region25
    $region24: #{tpu_custom_call.1} parent=1 // pred_region
      %55 = dma.done [#allocation4], 256
    $region25: #{tpu_custom_call.1} parent=1 // pred_fallthru
      _
    %56 = vsyncpa [#allocation3], 1
    %57 = vsyncpa [#allocation6], 1
    %58 = vsyncpa [#allocation4], 1

</llo_original>
